<compile_context>
chip_gen: v7x
topology: tpu7x:2x2x1
jax: 0.10.0
libtpu: 0.0.40
codegen_flags: <defaults>
</compile_context>

<pallas_src>
import functools
from typing import NamedTuple, Sequence, Tuple

import jax
import jax.numpy as jnp
from jax.experimental import pallas as pl
from jax.experimental.pallas import tpu as pltpu

_LANE = 128     # lane width  (last dim alignment)
_SUBLANE = 8    # sublane width for f32 (second-to-last dim alignment)


def _round_up(n: int, m: int) -> int:
    return ((n + m - 1) // m) * m


def _default_tile_m() -> int:
    # v5e: 4x128x128 MXU -> M=128 already saturates it and halves VMEM temporaries.
    # v6e/v7x: 256x256 MXU -> 256 rows per step.
    try:
        kind = jax.devices()[0].device_kind.lower()
    except Exception:  # pragma: no cover
        kind = ""
    return 128 if "v5" in kind else 256


def _choose_tile_m(rows: int, max_tile: int) -> int:
    """Pick a row tile: multiple of 8, minimal junk-row padding, >=2 grid steps
    whenever there is enough work (so v7x's two TensorCores both get rows)."""
    m8 = _round_up(max(rows, 1), _SUBLANE)
    max_tile = max(_SUBLANE, min(_round_up(max_tile, _SUBLANE), m8))
    if m8 >= 2 * _SUBLANE:
        # cap so the "parallel" grid axis has at least 2 steps
        max_tile = min(max_tile, _round_up((m8 + 1) // 2, _SUBLANE))
    # prefer a tile that divides the 8-aligned row count exactly (zero extra pad rows)
    for t in range(max_tile, _SUBLANE - 1, -_SUBLANE):
        if m8 % t == 0:
            return t
    return max_tile


# ----------------------------------------------------------------------------
# Parameters: init (nn.Linear-compatible) + one-time padding / dtype cast
# ----------------------------------------------------------------------------

class MLPParams(NamedTuple):
    weights: Tuple[jax.Array, ...]   # padded (fin_pad, fout_pad), param dtype (bf16 default)
    biases: Tuple[jax.Array, ...]    # padded (1, fout_pad), f32
    in_features: int                 # unpadded input feature dim
    out_features: int                # unpadded output feature dim


def init_mlp_params(key, sizes: Sequence[int], dtype=jnp.float32):
    """nn.Linear-compatible init: W (out,in), b (out,); returned as [(W^T, b), ...]."""
    params = []
    for i in range(len(sizes) - 1):
        fan_in, fan_out = sizes[i], sizes[i + 1]
        key, kw, kb = jax.random.split(key, 3)
        bound = 1.0 / (fan_in ** 0.5)
        w = jax.random.uniform(kw, (fan_out, fan_in), dtype, -bound, bound)
        b = jax.random.uniform(kb, (fan_out,), dtype, -bound, bound)
        params.append((w.T, b))
    return params


def prepare_mlp_params(params, param_dtype=jnp.bfloat16) -> MLPParams:
    """Pad every (W^T, b) to lane-dense (multiple-of-128) shapes and cast weights
    to param_dtype ONCE.  Do this at init time; mlp_forward never touches it."""
    weights, biases = [], []
    for (w_t, b) in params:
        f_in, f_out = w_t.shape
        f_in_p = _round_up(f_in, _LANE)
        f_out_p = _round_up(f_out, _LANE)
        w_p = jnp.zeros((f_in_p, f_out_p), param_dtype)
        w_p = w_p.at[:f_in, :f_out].set(w_t.astype(param_dtype))
        # bias stays f32: tiny memory, keeps the epilogue exact.
        b_p = jnp.zeros((1, f_out_p), jnp.float32)
        b_p = b_p.at[:, :f_out].set(b.astype(jnp.float32).reshape(1, f_out))
        weights.append(w_p)
        biases.append(b_p)
    return MLPParams(tuple(weights), tuple(biases),
                     in_features=params[0][0].shape[0],
                     out_features=params[-1][0].shape[1])


# ----------------------------------------------------------------------------
# Kernel
# ----------------------------------------------------------------------------

def _fused_mlp_kernel(*refs, num_layers: int):
    """refs = (x_ref, w0, b0, w1, b1, ..., o_ref).

    x_ref: (TILE_M, Fin_pad)   wK: (FinK_pad, FoutK_pad)   bK: (1, FoutK_pad) f32
    o_ref: (TILE_M, Fout_last_pad)
    All intermediates are chained as values -> they live in vregs/VMEM only.
    """
    x_ref = refs[0]
    o_ref = refs[-1]
    p = refs[1:-1]

    h = x_ref[...]
    for i in range(num_layers):
        w = p[2 * i][...]
        b = p[2 * i + 1][...]
        # bf16 (or param dtype) on the MXU, f32 accumulation.
        h = jnp.dot(h.astype(w.dtype), w, preferred_element_type=jnp.float32)
        h = h + b                                  # f32 bias, broadcasts over rows
        if i < num_layers - 1:                     # Tanh after every layer but the last
            h = jnp.tanh(h)                        # EUP transcendental, f32 epilogue
    o_ref[...] = h.astype(o_ref.dtype)


# ----------------------------------------------------------------------------
# Wrapper
# ----------------------------------------------------------------------------

def mlp_forward(x, params: MLPParams, *, tile_m: int | None = None):
    """Fused forward pass. x: (..., Fin).  params: prepare_mlp_params(...) output."""
    orig_shape = x.shape
    fin = orig_shape[-1]
    assert fin == params.in_features, (fin, params.in_features)
    rows = 1
    for d in orig_shape[:-1]:
        rows *= d
    x2 = x.reshape(rows, fin)

    num_layers = len(params.weights)
    fin_pad = params.weights[0].shape[0]
    fout_last = params.out_features
    fout_last_pad = params.weights[-1].shape[1]

    # ---- row tiling (only x needs per-call padding) ----
    if tile_m is None:
        tile_m = _default_tile_m()
    tile_m = _choose_tile_m(rows, tile_m)
    b_pad = _round_up(_round_up(rows, _SUBLANE), tile_m)
    x_p = jnp.zeros((b_pad, fin_pad), x2.dtype).at[:rows, :fin].set(x2)
    grid = (b_pad // tile_m,)

    # ---- VMEM budget (resident weights + activation temporaries + I/O buffers) ----
    out_itemsize = jnp.dtype(x.dtype).itemsize
    max_fout_pad = max(w.shape[1] for w in params.weights)
    resident_param_bytes = sum(w.size * w.dtype.itemsize for w in params.weights) + \
                           sum(b.size * b.dtype.itemsize for b in params.biases)
    if resident_param_bytes > 40 * 1024 * 1024:
        # TODO(synk): tile the widest layer over its output-feature (N) dim (extra
        # grid axis or pltpu.emit_pipeline inside the body) instead of keeping all
        # weights resident -- an all-resident MLP this size will not fit v7x's
        # 64 MiB/TC VMEM.
        pass

    def vmem_limit(single_buffer_weights: bool) -> int:
        wmult = 1 if single_buffer_weights else 2
        need = 0
        need += 2 * tile_m * fin_pad * x_p.dtype.itemsize          # x double-buffer
        need += 2 * tile_m * fout_last_pad * out_itemsize          # out double-buffer
        need += wmult * resident_param_bytes                       # weights + biases
        need += 3 * tile_m * max(fin_pad, max_fout_pad) * 4        # f32 activation temps
        limit = int(need * 1.25) + (1 << 20)
        return int(min(max(limit, 32 * 1024 * 1024), 100 * 1024 * 1024))

    # ---- advisory cost estimate for XLA scheduling ----
    flops = 0
    transcendentals = 0
    bytes_accessed = x_p.size * x_p.dtype.itemsize + b_pad * fout_last_pad * out_itemsize
    for li, w in enumerate(params.weights):
        flops += 2 * b_pad * w.shape[0] * w.shape[1]
        if li < num_layers - 1:
            transcendentals += b_pad * w.shape[1]
    bytes_accessed += resident_param_bytes

    kernel = functools.partial(_fused_mlp_kernel, num_layers=num_layers)

    def launch(single_buffer_weights: bool):
        in_specs = [pl.BlockSpec((tile_m, fin_pad), lambda i: (i, 0))]
        flat_inputs = [x_p]
        for w_p, b_p in zip(params.weights, params.biases):
            if single_buffer_weights:
                # constant index_map -> loaded once; single buffer halves resident VMEM
                in_specs.append(pl.BlockSpec(w_p.shape, lambda i: (0, 0),
                                             pipeline_mode=pl.Buffered(1)))
                in_specs.append(pl.BlockSpec(b_p.shape, lambda i: (0, 0),
                                             pipeline_mode=pl.Buffered(1)))
            else:
                in_specs.append(pl.BlockSpec(w_p.shape, lambda i: (0, 0)))
                in_specs.append(pl.BlockSpec(b_p.shape, lambda i: (0, 0)))
            flat_inputs.append(w_p)
            flat_inputs.append(b_p)
        out_specs = pl.BlockSpec((tile_m, fout_last_pad), lambda i: (i, 0))

        return pl.pallas_call(
            kernel,
            out_shape=jax.ShapeDtypeStruct((b_pad, fout_last_pad), x.dtype),
            grid=grid,
            in_specs=in_specs,
            out_specs=out_specs,
            compiler_params=pltpu.CompilerParams(
                dimension_semantics=("parallel",),
                vmem_limit_bytes=vmem_limit(single_buffer_weights)),
            cost_estimate=pl.CostEstimate(
                flops=flops,
                transcendentals=transcendentals,
                bytes_accessed=bytes_accessed),
        )(*flat_inputs)

    try:
        out_p = launch(single_buffer_weights=True)
    except Exception:
        # Fallback if this JAX build rejects pipeline_mode=pl.Buffered(1).
        out_p = launch(single_buffer_weights=False)

    out = out_p[:rows, :fout_last]
    return out.reshape(*orig_shape[:-1], fout_last)


# ----------------------------------------------------------------------------
# Reference + self-test
# ----------------------------------------------------------------------------

def mlp_reference(x, params):
    n = len(params)
    for i, (w_t, b) in enumerate(params):
        x = jnp.dot(x, w_t, precision=jax.lax.Precision.HIGHEST) + b.reshape(1, -1)
        if i < n - 1:
            x = jnp.tanh(x)
    return x


if __name__ == "__main__":
    # Small shapes consistent with the module: MLP(sizes=(32, 64, 48)), batch=4.
    sizes = (32, 64, 48)
    batch = 4

    key = jax.random.PRNGKey(0)
    key, kx = jax.random.split(key)
    x = jax.random.normal(kx, (batch, sizes[0]), dtype=jnp.float32)

    raw_params = init_mlp_params(key, sizes)          # f32, nn.Linear-compatible
    ref = jax.block_until_ready(mlp_reference(x, raw_params))

    # exact path: f32 weights on the MXU (tight tolerance)
    p_f32 = prepare_mlp_params(raw_params, param_dtype=jnp.float32)
    out_f32 = jax.block_until_ready(mlp_forward(x, p_f32))
    assert out_f32.shape == (batch, sizes[-1]), out_f32.shape
    assert jnp.allclose(out_f32, ref, atol=2e-3, rtol=2e-3), "f32 path mismatch vs reference"

    # fast path: bf16 weights / intermediates, f32 accumulation (looser tolerance)
    p_bf16 = prepare_mlp_params(raw_params, param_dtype=jnp.bfloat16)
    out_bf16 = jax.block_until_ready(mlp_forward(x, p_bf16))
    assert out_bf16.shape == (batch, sizes[-1]), out_bf16.shape
    assert jnp.allclose(out_bf16, ref, atol=5e-2, rtol=5e-2), "bf16 path mismatch vs reference"

    print("KERNEL_OK")
</pallas_src>

<mosaic_0001>
module attributes {stable_mosaic.version = 11 : i64} {
  func.func @_fused_mlp_kernel(%arg0: i32, %arg1: memref<8x128xf32, #tpu.memory_space<vmem>>, %arg2: memref<128x128xf32, #tpu.memory_space<vmem>>, %arg3: memref<1x128xf32, #tpu.memory_space<vmem>>, %arg4: memref<128x128xf32, #tpu.memory_space<vmem>>, %arg5: memref<1x128xf32, #tpu.memory_space<vmem>>, %arg6: memref<8x128xf32, #tpu.memory_space<vmem>>) attributes {dimension_semantics = [#tpu.dimension_semantics<parallel>], iteration_bounds = array<i64: 1>, scalar_prefetch = 0 : i64, scratch_operands = 0 : i64, tpu.core_type = #tpu.core_type<tc>, window_params = [{transform_indices = @transform_0, window_bounds = array<i64: 8, 128>}, {pipeline_mode = #tpu.pipeline_mode<synchronous>, transform_indices = @transform_1, window_bounds = array<i64: 128, 128>}, {pipeline_mode = #tpu.pipeline_mode<synchronous>, transform_indices = @transform_2, window_bounds = array<i64: 1, 128>}, {pipeline_mode = #tpu.pipeline_mode<synchronous>, transform_indices = @transform_3, window_bounds = array<i64: 128, 128>}, {pipeline_mode = #tpu.pipeline_mode<synchronous>, transform_indices = @transform_4, window_bounds = array<i64: 1, 128>}, {transform_indices = @transform_5, window_bounds = array<i64: 8, 128>}]} {
    %c0 = arith.constant 0 : index
    %c0_0 = arith.constant 0 : index
    %0 = vector.load %arg1[%c0, %c0_0] : memref<8x128xf32, #tpu.memory_space<vmem>>, vector<8x128xf32>
    %c0_1 = arith.constant 0 : index
    %c0_2 = arith.constant 0 : index
    %1 = vector.load %arg2[%c0_1, %c0_2] : memref<128x128xf32, #tpu.memory_space<vmem>>, vector<128x128xf32>
    %c0_3 = arith.constant 0 : index
    %c0_4 = arith.constant 0 : index
    %2 = vector.load %arg3[%c0_3, %c0_4] : memref<1x128xf32, #tpu.memory_space<vmem>>, vector<1x128xf32>
    %cst = arith.constant dense<0.000000e+00> : vector<8x128xf32>
    %3 = tpu.matmul %0, %1, %cst {dimension_numbers = #tpu.dot_dimension_numbers<[1], [0], [0], [1], [0, 0, 1, 1], [], []>} : vector<8x128xf32>, vector<128x128xf32>, vector<8x128xf32> -> vector<8x128xf32>
    %4 = vector.broadcast %2 : vector<1x128xf32> to vector<8x128xf32>
    %5 = arith.addf %3, %4 : vector<8x128xf32>
    %6 = math.tanh %5 : vector<8x128xf32>
    %c0_5 = arith.constant 0 : index
    %c0_6 = arith.constant 0 : index
    %7 = vector.load %arg4[%c0_5, %c0_6] : memref<128x128xf32, #tpu.memory_space<vmem>>, vector<128x128xf32>
    %c0_7 = arith.constant 0 : index
    %c0_8 = arith.constant 0 : index
    %8 = vector.load %arg5[%c0_7, %c0_8] : memref<1x128xf32, #tpu.memory_space<vmem>>, vector<1x128xf32>
    %cst_9 = arith.constant dense<0.000000e+00> : vector<8x128xf32>
    %9 = tpu.matmul %6, %7, %cst_9 {dimension_numbers = #tpu.dot_dimension_numbers<[1], [0], [0], [1], [0, 0, 1, 1], [], []>} : vector<8x128xf32>, vector<128x128xf32>, vector<8x128xf32> -> vector<8x128xf32>
    %10 = vector.broadcast %8 : vector<1x128xf32> to vector<8x128xf32>
    %11 = arith.addf %9, %10 : vector<8x128xf32>
    %c0_10 = arith.constant 0 : index
    %c0_11 = arith.constant 0 : index
    %12 = vector.load %arg6[%c0_10, %c0_11] : memref<8x128xf32, #tpu.memory_space<vmem>>, vector<8x128xf32>
    tpu.vector_store %arg6[%c0_10, %c0_11], %11 {strides = array<i32>} : memref<8x128xf32, #tpu.memory_space<vmem>>, vector<8x128xf32>,
    return
  }
  func.func @transform_0(%arg0: i32) -> (i32, i32) {
    %c0_i32 = arith.constant 0 : i32
    %c0_i32_0 = arith.constant 0 : i32
    return %arg0, %c0_i32 : i32, i32
  }
  func.func @transform_1(%arg0: i32) -> (i32, i32) {
    %c0_i32 = arith.constant 0 : i32
    %c0_i32_0 = arith.constant 0 : i32
    %c0_i32_1 = arith.constant 0 : i32
    return %c0_i32, %c0_i32_0 : i32, i32
  }
  func.func @transform_2(%arg0: i32) -> (i32, i32) {
    %c0_i32 = arith.constant 0 : i32
    %c0_i32_0 = arith.constant 0 : i32
    %c0_i32_1 = arith.constant 0 : i32
    return %c0_i32, %c0_i32_0 : i32, i32
  }
  func.func @transform_3(%arg0: i32) -> (i32, i32) {
    %c0_i32 = arith.constant 0 : i32
    %c0_i32_0 = arith.constant 0 : i32
    %c0_i32_1 = arith.constant 0 : i32
    return %c0_i32, %c0_i32_0 : i32, i32
  }
  func.func @transform_4(%arg0: i32) -> (i32, i32) {
    %c0_i32 = arith.constant 0 : i32
    %c0_i32_0 = arith.constant 0 : i32
    %c0_i32_1 = arith.constant 0 : i32
    return %c0_i32, %c0_i32_0 : i32, i32
  }
  func.func @transform_5(%arg0: i32) -> (i32, i32) {
    %c0_i32 = arith.constant 0 : i32
    %c0_i32_0 = arith.constant 0 : i32
    return %arg0, %c0_i32 : i32, i32
  }
}

module attributes {stable_mosaic.version = 11 : i64} {
  func.func @_fused_mlp_kernel(%arg0: i32, %arg1: memref<8x128xf32, #tpu.memory_space<vmem>>, %arg2: memref<128x128xf32, #tpu.memory_space<vmem>>, %arg3: memref<1x128xf32, #tpu.memory_space<vmem>>, %arg4: memref<128x128xf32, #tpu.memory_space<vmem>>, %arg5: memref<1x128xf32, #tpu.memory_space<vmem>>, %arg6: memref<8x128xf32, #tpu.memory_space<vmem>>) attributes {dimension_semantics = [#tpu.dimension_semantics<parallel>], iteration_bounds = array<i64: 1>, scalar_prefetch = 0 : i64, scratch_operands = 0 : i64, tpu.core_type = #tpu.core_type<tc>, window_params = [{transform_indices = @transform_0, window_bounds = array<i64: 8, 128>}, {pipeline_mode = #tpu.pipeline_mode<synchronous>, transform_indices = @transform_1, window_bounds = array<i64: 128, 128>}, {pipeline_mode = #tpu.pipeline_mode<synchronous>, transform_indices = @transform_2, window_bounds = array<i64: 1, 128>}, {pipeline_mode = #tpu.pipeline_mode<synchronous>, transform_indices = @transform_3, window_bounds = array<i64: 128, 128>}, {pipeline_mode = #tpu.pipeline_mode<synchronous>, transform_indices = @transform_4, window_bounds = array<i64: 1, 128>}, {transform_indices = @transform_5, window_bounds = array<i64: 8, 128>}]} {
    %c0 = arith.constant 0 : index
    %c0_0 = arith.constant 0 : index
    %0 = vector.load %arg1[%c0, %c0_0] : memref<8x128xf32, #tpu.memory_space<vmem>>, vector<8x128xf32>
    %c0_1 = arith.constant 0 : index
    %c0_2 = arith.constant 0 : index
    %1 = vector.load %arg2[%c0_1, %c0_2] : memref<128x128xf32, #tpu.memory_space<vmem>>, vector<128x128xf32>
    %c0_3 = arith.constant 0 : index
    %c0_4 = arith.constant 0 : index
    %2 = vector.load %arg3[%c0_3, %c0_4] : memref<1x128xf32, #tpu.memory_space<vmem>>, vector<1x128xf32>
    %cst = arith.constant dense<0.000000e+00> : vector<8x128xf32>
    %3 = tpu.matmul %0, %1, %cst {dimension_numbers = #tpu.dot_dimension_numbers<[1], [0], [0], [1], [0, 0, 1, 1], [], []>} : vector<8x128xf32>, vector<128x128xf32>, vector<8x128xf32> -> vector<8x128xf32>
    %4 = vector.broadcast %2 : vector<1x128xf32> to vector<8x128xf32>
    %5 = arith.addf %3, %4 : vector<8x128xf32>
    %6 = math.tanh %5 : vector<8x128xf32>
    %c0_5 = arith.constant 0 : index
    %c0_6 = arith.constant 0 : index
    %7 = vector.load %arg4[%c0_5, %c0_6] : memref<128x128xf32, #tpu.memory_space<vmem>>, vector<128x128xf32>
    %c0_7 = arith.constant 0 : index
    %c0_8 = arith.constant 0 : index
    %8 = vector.load %arg5[%c0_7, %c0_8] : memref<1x128xf32, #tpu.memory_space<vmem>>, vector<1x128xf32>
    %cst_9 = arith.constant dense<0.000000e+00> : vector<8x128xf32>
    %9 = tpu.matmul %6, %7, %cst_9 {dimension_numbers = #tpu.dot_dimension_numbers<[1], [0], [0], [1], [0, 0, 1, 1], [], []>} : vector<8x128xf32>, vector<128x128xf32>, vector<8x128xf32> -> vector<8x128xf32>
    %10 = vector.broadcast %8 : vector<1x128xf32> to vector<8x128xf32>
    %11 = arith.addf %9, %10 : vector<8x128xf32>
    %c0_10 = arith.constant 0 : index
    %c0_11 = arith.constant 0 : index
    %12 = vector.load %arg6[%c0_10, %c0_11] : memref<8x128xf32, #tpu.memory_space<vmem>>, vector<8x128xf32>
    tpu.vector_store %arg6[%c0_10, %c0_11], %11 {strides = array<i32>} : memref<8x128xf32, #tpu.memory_space<vmem>>, vector<8x128xf32>,
    return
  }
  func.func @transform_0(%arg0: i32) -> (i32, i32) {
    %c0_i32 = arith.constant 0 : i32
    %c0_i32_0 = arith.constant 0 : i32
    return %arg0, %c0_i32 : i32, i32
  }
  func.func @transform_1(%arg0: i32) -> (i32, i32) {
    %c0_i32 = arith.constant 0 : i32
    %c0_i32_0 = arith.constant 0 : i32
    %c0_i32_1 = arith.constant 0 : i32
    return %c0_i32, %c0_i32_0 : i32, i32
  }
  func.func @transform_2(%arg0: i32) -> (i32, i32) {
    %c0_i32 = arith.constant 0 : i32
    %c0_i32_0 = arith.constant 0 : i32
    %c0_i32_1 = arith.constant 0 : i32
    return %c0_i32, %c0_i32_0 : i32, i32
  }
  func.func @transform_3(%arg0: i32) -> (i32, i32) {
    %c0_i32 = arith.constant 0 : i32
    %c0_i32_0 = arith.constant 0 : i32
    %c0_i32_1 = arith.constant 0 : i32
    return %c0_i32, %c0_i32_0 : i32, i32
  }
  func.func @transform_4(%arg0: i32) -> (i32, i32) {
    %c0_i32 = arith.constant 0 : i32
    %c0_i32_0 = arith.constant 0 : i32
    %c0_i32_1 = arith.constant 0 : i32
    return %c0_i32, %c0_i32_0 : i32, i32
  }
  func.func @transform_5(%arg0: i32) -> (i32, i32) {
    %c0_i32 = arith.constant 0 : i32
    %c0_i32_0 = arith.constant 0 : i32
    return %arg0, %c0_i32 : i32, i32
  }
}

</mosaic_0001>

<llo_original>
// kernel: tpu_custom_call.1
$region0: #{tpu_custom_call.1}
  #allocation0 [shape = 'u32[]', space=smem, size = 0x4, offset = 0x4, fixed_abs, tag = 'smem constant byte address 0x4 - core index']
  #allocation1 [shape = 'u32[144,128]{1,0:T(1,128)}', space=vmem, size = 0x12000, scoped, tag = 'internal scratch']
  %s0 = inlined_call_operand.hbm [shape: f32[8,128], index: 0, kind: input, shape index: {}]
  %s1 = inlined_call_operand.hbm [shape: f32[128,128], index: 1, kind: input, shape index: {}]
  %s2 = inlined_call_operand.vmem [shape: f32[1,128], index: 2, kind: input, shape index: {}]
  %s3 = inlined_call_operand.hbm [shape: f32[128,128], index: 3, kind: input, shape index: {}]
  %s4 = inlined_call_operand.vmem [shape: f32[1,128], index: 4, kind: input, shape index: {}]
  %s5 = inlined_call_operand.hbm [shape: f32[8,128], index: 5, kind: output, shape index: {}]
  %s6 = sld [smem:[#allocation0]]
  $region42: #{tpu_custom_call.1} parent=0
    _
  %s8 = ssub.s32 1, %s6
  %s9 = scalar_select 0, %s8, %s6
  $region1: #{tpu_custom_call.1} parent=0
    #allocation2 [shape = 'u8[4096]{0}', space=vmem, size = 0x1000, scoped, tag = 'input window, operand 0, single buffered']
    #allocation3 [shape = 's32[1]{0}', space=sflag, size = 0x4, scoped, tag = 'scoped memory for tpu_custom_call.1']
    #allocation4 [shape = 's32[1]{0}', space=sflag, size = 0x4, scoped, tag = 'scoped memory for tpu_custom_call.1']
    #allocation5 [shape = 'u8[65536]{0}', space=vmem, size = 0x10000, scoped, tag = 'input window, operand 1, single buffered']
    #allocation6 [shape = 's32[1]{0}', space=sflag, size = 0x4, scoped, tag = 'scoped memory for tpu_custom_call.1']
    #allocation7 [shape = 'u8[65536]{0}', space=vmem, size = 0x10000, scoped, tag = 'input window, operand 3, single buffered']
    #allocation8 [shape = 'u8[4096]{0}', space=vmem, size = 0x1000, scoped, tag = 'output window, operand 0, single buffered']
    %10 = vsyncpa [#allocation3], 0
    %11 = vsyncpa [#allocation6], 0
    %12 = vsyncpa [#allocation4], 0
    // Predicated region
    $region2: #{tpu_custom_call.1} parent=1 // pred_check
      _
    $region3: #{tpu_custom_call.1} parent=1 // pred_check_branch
      %14 = sbr.rel (0) target = $region5
    $region4: #{tpu_custom_call.1} parent=1 // pred_region
      %s16 = ssub.s32 128, 128
      %17 = vsyncadd [#allocation3], %s16
      %s19 = sshll.u32 [#allocation2], 4
      %s20 = int_to_ptr.vmem [resolvable:$true] %s19
      %22 = dma.hbm_to_vmem [thread:$0]  %s0, 128, %s20, [#allocation3]
    $region5: #{tpu_custom_call.1} parent=1 // pred_fallthru
      _
    // Predicated region
    $region6: #{tpu_custom_call.1} parent=1 // pred_check
      _
    $region7: #{tpu_custom_call.1} parent=1 // pred_check_branch
      %24 = sbr.rel (0) target = $region9
    $region8: #{tpu_custom_call.1} parent=1 // pred_region
      %s26 = ssub.s32 2048, 2048
      %27 = vsyncadd [#allocation6], %s26
      %s28 = sshll.u32 [#allocation5], 4
      %s29 = int_to_ptr.vmem [resolvable:$true] %s28
      %34 = dma.hbm_to_vmem [thread:$0]  %s1, 2048, %s29, [#allocation6], 128, 128, 8
    $region9: #{tpu_custom_call.1} parent=1 // pred_fallthru
      _
    // Predicated region
    $region10: #{tpu_custom_call.1} parent=1 // pred_check
      _
    $region11: #{tpu_custom_call.1} parent=1 // pred_check_branch
      %36 = sbr.rel (0) target = $region13
    $region12: #{tpu_custom_call.1} parent=1 // pred_region
      _
    $region13: #{tpu_custom_call.1} parent=1 // pred_fallthru
      _
    // Predicated region
    $region14: #{tpu_custom_call.1} parent=1 // pred_check
      _
    $region15: #{tpu_custom_call.1} parent=1 // pred_check_branch
      %38 = sbr.rel (0) target = $region17
    $region16: #{tpu_custom_call.1} parent=1 // pred_region
      %s40 = ssub.s32 2048, 2048
      %41 = vsyncadd [#allocation6], %s40
      %s42 = sshll.u32 [#allocation7], 4
      %s43 = int_to_ptr.vmem [resolvable:$true] %s42
      %48 = dma.hbm_to_vmem [thread:$0]  %s3, 2048, %s43, [#allocation6], 128, 128, 8
    $region17: #{tpu_custom_call.1} parent=1 // pred_fallthru
      _
    // Predicated region
    $region18: #{tpu_custom_call.1} parent=1 // pred_check
      _
    $region19: #{tpu_custom_call.1} parent=1 // pred_check_branch
      %50 = sbr.rel (0) target = $region21
    $region20: #{tpu_custom_call.1} parent=1 // pred_region
      _
    $region21: #{tpu_custom_call.1} parent=1 // pred_fallthru
      _
    // Predicated region
    $region22: #{tpu_custom_call.1} parent=1 // pred_check
      _
    $region23: #{tpu_custom_call.1} parent=1 // pred_check_branch
      %52 = sbr.rel (0) target = $region25
    $region24: #{tpu_custom_call.1} parent=1 // pred_region
      %53 = dma.done [#allocation3], 128
    $region25: #{tpu_custom_call.1} parent=1 // pred_fallthru
      _
    // Predicated region
    $region26: #{tpu_custom_call.1} parent=1 // pred_check
      _
    $region27: #{tpu_custom_call.1} parent=1 // pred_check_branch
      %55 = sbr.rel (0) target = $region29
    $region28: #{tpu_custom_call.1} parent=1 // pred_region
      %56 = dma.done [#allocation6], 2048
    $region29: #{tpu_custom_call.1} parent=1 // pred_fallthru
      _
    // Predicated region
    $region30: #{tpu_custom_call.1} parent=1 // pred_check
      _
    $region31: #{tpu_custom_call.1} parent=1 // pred_check_branch
      %58 = sbr.rel (0) target = $region33
    $region32: #{tpu_custom_call.1} parent=1 // pred_region
      %59 = dma.done [#allocation6], 2048
    $region33: #{tpu_custom_call.1} parent=1 // pred_fallthru
      _
    %v60 = vld [vmem:[#allocation2] sm:$0xff]
    %v61 = vld [vmem:[#allocation5] sm:$0xff]
    %v62 = vld [vmem:[#allocation5 + $0x8] sm:$0xff]
    %v63 = vld [vmem:[#allocation5 + $0x10] sm:$0xff]
    %v64 = vld [vmem:[#allocation5 + $0x18] sm:$0xff]
    %v65 = vld [vmem:[#allocation5 + $0x20] sm:$0xff]
    %v66 = vld [vmem:[#allocation5 + $0x28] sm:$0xff]
    %v67 = vld [vmem:[#allocation5 + $0x30] sm:$0xff]
    %v68 = vld [vmem:[#allocation5 + $0x38] sm:$0xff]
    %v69 = vld [vmem:[#allocation5 + $0x40] sm:$0xff]
    %v70 = vld [vmem:[#allocation5 + $0x48] sm:$0xff]
    %v71 = vld [vmem:[#allocation5 + $0x50] sm:$0xff]
    %v72 = vld [vmem:[#allocation5 + $0x58] sm:$0xff]
    %v73 = vld [vmem:[#allocation5 + $0x60] sm:$0xff]
    %v74 = vld [vmem:[#allocation5 + $0x68] sm:$0xff]
    %v75 = vld [vmem:[#allocation5 + $0x70] sm:$0xff]
    %v76 = vld [vmem:[#allocation5 + $0x78] sm:$0xff]
    %v77 = vld [vmem:[%s2] sm:$0x1]
    %v79 = vlaneseq
    %v80 = vshrl.u32 %v79, 7
    %v81 = vsub.s32 0, %v80
    %v82 = vrot.slane %v77, %v81
    %84 = vmatprep.subr.mxu0 0.0
    %85 = vmatpush1.msra.mxu0 %v61
    %86 = vmatprep.subr.mxu0 0.0
    %87 = vmatpush1.msra.mxu0 %v62
    %88 = vmatprep.subr.mxu0 0.0
    %89 = vmatpush1.msra.mxu0 %v63
    %90 = vmatprep.subr.mxu0 0.0
    %91 = vmatpush1.msra.mxu0 %v64
    %92 = vmatprep.subr.mxu0 0.0
    %93 = vmatpush1.msra.mxu0 %v65
    %94 = vmatprep.subr.mxu0 0.0
    %95 = vmatpush1.msra.mxu0 %v66
    %96 = vmatprep.subr.mxu0 0.0
    %97 = vmatpush1.msra.mxu0 %v67
    %98 = vmatprep.subr.mxu0 0.0
    %99 = vmatpush1.msra.mxu0 %v68
    %100 = vmatprep.subr.mxu0 0.0
    %101 = vmatpush1.msra.mxu0 %v69
    %102 = vmatprep.subr.mxu0 0.0
    %103 = vmatpush1.msra.mxu0 %v70
    %104 = vmatprep.subr.mxu0 0.0
    %105 = vmatpush1.msra.mxu0 %v71
    %106 = vmatprep.subr.mxu0 0.0
    %107 = vmatpush1.msra.mxu0 %v72
    %108 = vmatprep.subr.mxu0 0.0
    %109 = vmatpush1.msra.mxu0 %v73
    %110 = vmatprep.subr.mxu0 0.0
    %111 = vmatpush1.msra.mxu0 %v74
    %112 = vmatprep.subr.mxu0 0.0
    %113 = vmatpush1.msra.mxu0 %v75
    %114 = vmatprep.subr.mxu0 0.0
    %115 = vmatpush1.msra.mxu0 %v76
    %116 = vmatprep.subr.mxu0 0.0
    %117 = vmatpush1.msra.mxu0 0.0
    %118 = vmatprep.subr.mxu0 0.0
    %119 = vmatpush1.msra.mxu0 0.0
    %120 = vmatprep.subr.mxu0 0.0
    %121 = vmatpush1.msra.mxu0 0.0
    %122 = vmatprep.subr.mxu0 0.0
    %123 = vmatpush1.msra.mxu0 0.0
    %124 = vmatprep.subr.mxu0 0.0
    %125 = vmatpush1.msra.mxu0 0.0
    %126 = vmatprep.subr.mxu0 0.0
    %127 = vmatpush1.msra.mxu0 0.0
    %128 = vmatprep.subr.mxu0 0.0
    %129 = vmatpush1.msra.mxu0 0.0
    %130 = vmatprep.subr.mxu0 0.0
    %131 = vmatpush1.msra.mxu0 0.0
    %132 = vmatprep.subr.mxu0 0.0
    %133 = vmatpush1.msra.mxu0 0.0
    %134 = vmatprep.subr.mxu0 0.0
    %135 = vmatpush1.msra.mxu0 0.0
    %136 = vmatprep.subr.mxu0 0.0
    %137 = vmatpush1.msra.mxu0 0.0
    %138 = vmatprep.subr.mxu0 0.0
    %139 = vmatpush1.msra.mxu0 0.0
    %140 = vmatprep.subr.mxu0 0.0
    %141 = vmatpush1.msra.mxu0 0.0
    %142 = vmatprep.subr.mxu0 0.0
    %143 = vmatpush1.msra.mxu0 0.0
    %144 = vmatprep.subr.mxu0 0.0
    %145 = vmatpush1.msra.mxu0 0.0
    %146 = vmatprep.subr.mxu0 0.0
    %147 = vmatpush1.msra.mxu0 0.0
    %148 = vmatprep.mubr.f32.mxu0 0.0
    %149 = vmatmul.mubr.f32.gmra.mrb[0].mxu0 %v60
    %v150 = vpop.f32.mrb[0].mxu0
    %v151 = vadd.f32 %v82, %v150
    %v152 = vpop.f32.mrb[0].mxu0
    %153 = vdwg.mxu0
    %v154 = vtanh.pop %v151
    %v155 = vld [vmem:[#allocation7] sm:$0xff]
    %v156 = vld [vmem:[#allocation7 + $0x8] sm:$0xff]
    %v157 = vld [vmem:[#allocation7 + $0x10] sm:$0xff]
    %v158 = vld [vmem:[#allocation7 + $0x18] sm:$0xff]
    %v159 = vld [vmem:[#allocation7 + $0x20] sm:$0xff]
    %v160 = vld [vmem:[#allocation7 + $0x28] sm:$0xff]
    %v161 = vld [vmem:[#allocation7 + $0x30] sm:$0xff]
    %v162 = vld [vmem:[#allocation7 + $0x38] sm:$0xff]
    %v163 = vld [vmem:[#allocation7 + $0x40] sm:$0xff]
    %v164 = vld [vmem:[#allocation7 + $0x48] sm:$0xff]
    %v165 = vld [vmem:[#allocation7 + $0x50] sm:$0xff]
    %v166 = vld [vmem:[#allocation7 + $0x58] sm:$0xff]
    %v167 = vld [vmem:[#allocation7 + $0x60] sm:$0xff]
    %v168 = vld [vmem:[#allocation7 + $0x68] sm:$0xff]
    %v169 = vld [vmem:[#allocation7 + $0x70] sm:$0xff]
    %v170 = vld [vmem:[#allocation7 + $0x78] sm:$0xff]
    %v171 = vld [vmem:[%s4] sm:$0x1]
    %v173 = vlaneseq
    %v174 = vshrl.u32 %v173, 7
    %v175 = vsub.s32 0, %v174
    %v176 = vrot.slane %v171, %v175
    %178 = vmatprep.subr.mxu0 0.0
    %179 = vmatpush1.msra.mxu0 %v155
    %180 = vmatprep.subr.mxu0 0.0
    %181 = vmatpush1.msra.mxu0 %v156
    %182 = vmatprep.subr.mxu0 0.0
    %183 = vmatpush1.msra.mxu0 %v157
    %184 = vmatprep.subr.mxu0 0.0
    %185 = vmatpush1.msra.mxu0 %v158
    %186 = vmatprep.subr.mxu0 0.0
    %187 = vmatpush1.msra.mxu0 %v159
    %188 = vmatprep.subr.mxu0 0.0
    %189 = vmatpush1.msra.mxu0 %v160
    %190 = vmatprep.subr.mxu0 0.0
    %191 = vmatpush1.msra.mxu0 %v161
    %192 = vmatprep.subr.mxu0 0.0
    %193 = vmatpush1.msra.mxu0 %v162
    %194 = vmatprep.subr.mxu0 0.0
    %195 = vmatpush1.msra.mxu0 %v163
    %196 = vmatprep.subr.mxu0 0.0
    %197 = vmatpush1.msra.mxu0 %v164
    %198 = vmatprep.subr.mxu0 0.0
    %199 = vmatpush1.msra.mxu0 %v165
    %200 = vmatprep.subr.mxu0 0.0
    %201 = vmatpush1.msra.mxu0 %v166
    %202 = vmatprep.subr.mxu0 0.0
    %203 = vmatpush1.msra.mxu0 %v167
    %204 = vmatprep.subr.mxu0 0.0
    %205 = vmatpush1.msra.mxu0 %v168
    %206 = vmatprep.subr.mxu0 0.0
    %207 = vmatpush1.msra.mxu0 %v169
    %208 = vmatprep.subr.mxu0 0.0
    %209 = vmatpush1.msra.mxu0 %v170
    %210 = vmatprep.subr.mxu0 0.0
    %211 = vmatpush1.msra.mxu0 0.0
    %212 = vmatprep.subr.mxu0 0.0
    %213 = vmatpush1.msra.mxu0 0.0
    %214 = vmatprep.subr.mxu0 0.0
    %215 = vmatpush1.msra.mxu0 0.0
    %216 = vmatprep.subr.mxu0 0.0
    %217 = vmatpush1.msra.mxu0 0.0
    %218 = vmatprep.subr.mxu0 0.0
    %219 = vmatpush1.msra.mxu0 0.0
    %220 = vmatprep.subr.mxu0 0.0
    %221 = vmatpush1.msra.mxu0 0.0
    %222 = vmatprep.subr.mxu0 0.0
    %223 = vmatpush1.msra.mxu0 0.0
    %224 = vmatprep.subr.mxu0 0.0
    %225 = vmatpush1.msra.mxu0 0.0
    %226 = vmatprep.subr.mxu0 0.0
    %227 = vmatpush1.msra.mxu0 0.0
    %228 = vmatprep.subr.mxu0 0.0
    %229 = vmatpush1.msra.mxu0 0.0
    %230 = vmatprep.subr.mxu0 0.0
    %231 = vmatpush1.msra.mxu0 0.0
    %232 = vmatprep.subr.mxu0 0.0
    %233 = vmatpush1.msra.mxu0 0.0
    %234 = vmatprep.subr.mxu0 0.0
    %235 = vmatpush1.msra.mxu0 0.0
    %236 = vmatprep.subr.mxu0 0.0
    %237 = vmatpush1.msra.mxu0 0.0
    %238 = vmatprep.subr.mxu0 0.0
    %239 = vmatpush1.msra.mxu0 0.0
    %240 = vmatprep.subr.mxu0 0.0
    %241 = vmatpush1.msra.mxu0 0.0
    %242 = vmatprep.mubr.f32.mxu0 0.0
    %243 = vmatmul.mubr.f32.gmra.mrb[0].mxu0 %v154
    %v244 = vpop.f32.mrb[0].mxu0
    %v245 = vadd.f32 %v176, %v244
    %v246 = vpop.f32.mrb[0].mxu0
    %247 = vdwg.mxu0
    %248 = vst [vmem:[#allocation8] sm:$0xff] %v245
    // Predicated region
    $region34: #{tpu_custom_call.1} parent=1 // pred_check
      _
    $region35: #{tpu_custom_call.1} parent=1 // pred_check_branch
      %250 = sbr.rel (0) target = $region37
    $region36: #{tpu_custom_call.1} parent=1 // pred_region
      %s252 = ssub.s32 128, 128
      %253 = vsyncadd [#allocation4], %s252
      %s255 = sshll.u32 [#allocation8], 4
      %s256 = int_to_ptr.vmem [resolvable:$true] %s255
      %258 = dma.vmem_to_hbm [thread:$0]  %s256, 128, %s5, [#allocation4]
    $region37: #{tpu_custom_call.1} parent=1 // pred_fallthru
      _
    // Predicated region
    $region38: #{tpu_custom_call.1} parent=1 // pred_check
      _
    $region39: #{tpu_custom_call.1} parent=1 // pred_check_branch
      %260 = sbr.rel (0) target = $region41
    $region40: #{tpu_custom_call.1} parent=1 // pred_region
      %261 = dma.done [#allocation4], 128
    $region41: #{tpu_custom_call.1} parent=1 // pred_fallthru
      _
    %262 = vsyncpa [#allocation3], 1
    %263 = vsyncpa [#allocation6], 1
    %264 = vsyncpa [#allocation4], 1

// kernel: tpu_custom_call.1
$region0: #{tpu_custom_call.1}
  #allocation0 [shape = 'u32[]', space=smem, size = 0x4, offset = 0x4, fixed_abs, tag = 'smem constant byte address 0x4 - core index']
  #allocation1 [shape = 'u32[144,128]{1,0:T(1,128)}', space=vmem, size = 0x12000, scoped, tag = 'internal scratch']
  %s0 = inlined_call_operand.hbm [shape: f32[8,128], index: 0, kind: input, shape index: {}]
  %s1 = inlined_call_operand.hbm [shape: f32[128,128], index: 1, kind: input, shape index: {}]
  %s2 = inlined_call_operand.vmem [shape: f32[1,128], index: 2, kind: input, shape index: {}]
  %s3 = inlined_call_operand.hbm [shape: f32[128,128], index: 3, kind: input, shape index: {}]
  %s4 = inlined_call_operand.vmem [shape: f32[1,128], index: 4, kind: input, shape index: {}]
  %s5 = inlined_call_operand.hbm [shape: f32[8,128], index: 5, kind: output, shape index: {}]
  %s6 = sld [smem:[#allocation0]]
  $region42: #{tpu_custom_call.1} parent=0
    _
  %s8 = ssub.s32 1, %s6
  %s9 = scalar_select 0, %s8, %s6
  $region1: #{tpu_custom_call.1} parent=0
    #allocation2 [shape = 'u8[4096]{0}', space=vmem, size = 0x1000, scoped, tag = 'input window, operand 0, single buffered']
    #allocation3 [shape = 's32[1]{0}', space=sflag, size = 0x4, scoped, tag = 'scoped memory for tpu_custom_call.1']
    #allocation4 [shape = 's32[1]{0}', space=sflag, size = 0x4, scoped, tag = 'scoped memory for tpu_custom_call.1']
    #allocation5 [shape = 'u8[65536]{0}', space=vmem, size = 0x10000, scoped, tag = 'input window, operand 1, single buffered']
    #allocation6 [shape = 's32[1]{0}', space=sflag, size = 0x4, scoped, tag = 'scoped memory for tpu_custom_call.1']
    #allocation7 [shape = 'u8[65536]{0}', space=vmem, size = 0x10000, scoped, tag = 'input window, operand 3, single buffered']
    #allocation8 [shape = 'u8[4096]{0}', space=vmem, size = 0x1000, scoped, tag = 'output window, operand 0, single buffered']
    %10 = vsyncpa [#allocation3], 0
    %11 = vsyncpa [#allocation6], 0
    %12 = vsyncpa [#allocation4], 0
    // Predicated region
    $region2: #{tpu_custom_call.1} parent=1 // pred_check
      _
    $region3: #{tpu_custom_call.1} parent=1 // pred_check_branch
      %14 = sbr.rel (0) target = $region5
    $region4: #{tpu_custom_call.1} parent=1 // pred_region
      %s16 = ssub.s32 128, 128
      %17 = vsyncadd [#allocation3], %s16
      %s19 = sshll.u32 [#allocation2], 4
      %s20 = int_to_ptr.vmem [resolvable:$true] %s19
      %22 = dma.hbm_to_vmem [thread:$0]  %s0, 128, %s20, [#allocation3]
    $region5: #{tpu_custom_call.1} parent=1 // pred_fallthru
      _
    // Predicated region
    $region6: #{tpu_custom_call.1} parent=1 // pred_check
      _
    $region7: #{tpu_custom_call.1} parent=1 // pred_check_branch
      %24 = sbr.rel (0) target = $region9
    $region8: #{tpu_custom_call.1} parent=1 // pred_region
      %s26 = ssub.s32 2048, 2048
      %27 = vsyncadd [#allocation6], %s26
      %s28 = sshll.u32 [#allocation5], 4
      %s29 = int_to_ptr.vmem [resolvable:$true] %s28
      %34 = dma.hbm_to_vmem [thread:$0]  %s1, 2048, %s29, [#allocation6], 128, 128, 8
    $region9: #{tpu_custom_call.1} parent=1 // pred_fallthru
      _
    // Predicated region
    $region10: #{tpu_custom_call.1} parent=1 // pred_check
      _
    $region11: #{tpu_custom_call.1} parent=1 // pred_check_branch
      %36 = sbr.rel (0) target = $region13
    $region12: #{tpu_custom_call.1} parent=1 // pred_region
      _
    $region13: #{tpu_custom_call.1} parent=1 // pred_fallthru
      _
    // Predicated region
    $region14: #{tpu_custom_call.1} parent=1 // pred_check
      _
    $region15: #{tpu_custom_call.1} parent=1 // pred_check_branch
      %38 = sbr.rel (0) target = $region17
    $region16: #{tpu_custom_call.1} parent=1 // pred_region
      %s40 = ssub.s32 2048, 2048
      %41 = vsyncadd [#allocation6], %s40
      %s42 = sshll.u32 [#allocation7], 4
      %s43 = int_to_ptr.vmem [resolvable:$true] %s42
      %48 = dma.hbm_to_vmem [thread:$0]  %s3, 2048, %s43, [#allocation6], 128, 128, 8
    $region17: #{tpu_custom_call.1} parent=1 // pred_fallthru
      _
    // Predicated region
    $region18: #{tpu_custom_call.1} parent=1 // pred_check
      _
    $region19: #{tpu_custom_call.1} parent=1 // pred_check_branch
      %50 = sbr.rel (0) target = $region21
    $region20: #{tpu_custom_call.1} parent=1 // pred_region
      _
    $region21: #{tpu_custom_call.1} parent=1 // pred_fallthru
      _
    // Predicated region
    $region22: #{tpu_custom_call.1} parent=1 // pred_check
      _
    $region23: #{tpu_custom_call.1} parent=1 // pred_check_branch
      %52 = sbr.rel (0) target = $region25
    $region24: #{tpu_custom_call.1} parent=1 // pred_region
      %53 = dma.done [#allocation3], 128
    $region25: #{tpu_custom_call.1} parent=1 // pred_fallthru
      _
    // Predicated region
    $region26: #{tpu_custom_call.1} parent=1 // pred_check
      _
    $region27: #{tpu_custom_call.1} parent=1 // pred_check_branch
      %55 = sbr.rel (0) target = $region29
    $region28: #{tpu_custom_call.1} parent=1 // pred_region
      %56 = dma.done [#allocation6], 2048
    $region29: #{tpu_custom_call.1} parent=1 // pred_fallthru
      _
    // Predicated region
    $region30: #{tpu_custom_call.1} parent=1 // pred_check
      _
    $region31: #{tpu_custom_call.1} parent=1 // pred_check_branch
      %58 = sbr.rel (0) target = $region33
    $region32: #{tpu_custom_call.1} parent=1 // pred_region
      %59 = dma.done [#allocation6], 2048
    $region33: #{tpu_custom_call.1} parent=1 // pred_fallthru
      _
    %v60 = vld [vmem:[#allocation2] sm:$0xff]
    %v61 = vld [vmem:[#allocation5] sm:$0xff]
    %v62 = vld [vmem:[#allocation5 + $0x8] sm:$0xff]
    %v63 = vld [vmem:[#allocation5 + $0x10] sm:$0xff]
    %v64 = vld [vmem:[#allocation5 + $0x18] sm:$0xff]
    %v65 = vld [vmem:[#allocation5 + $0x20] sm:$0xff]
    %v66 = vld [vmem:[#allocation5 + $0x28] sm:$0xff]
    %v67 = vld [vmem:[#allocation5 + $0x30] sm:$0xff]
    %v68 = vld [vmem:[#allocation5 + $0x38] sm:$0xff]
    %v69 = vld [vmem:[#allocation5 + $0x40] sm:$0xff]
    %v70 = vld [vmem:[#allocation5 + $0x48] sm:$0xff]
    %v71 = vld [vmem:[#allocation5 + $0x50] sm:$0xff]
    %v72 = vld [vmem:[#allocation5 + $0x58] sm:$0xff]
    %v73 = vld [vmem:[#allocation5 + $0x60] sm:$0xff]
    %v74 = vld [vmem:[#allocation5 + $0x68] sm:$0xff]
    %v75 = vld [vmem:[#allocation5 + $0x70] sm:$0xff]
    %v76 = vld [vmem:[#allocation5 + $0x78] sm:$0xff]
    %v77 = vld [vmem:[%s2] sm:$0x1]
    %v79 = vlaneseq
    %v80 = vshrl.u32 %v79, 7
    %v81 = vsub.s32 0, %v80
    %v82 = vrot.slane %v77, %v81
    %84 = vmatprep.subr.mxu0 0.0
    %85 = vmatpush1.msra.mxu0 %v61
    %86 = vmatprep.subr.mxu0 0.0
    %87 = vmatpush1.msra.mxu0 %v62
    %88 = vmatprep.subr.mxu0 0.0
    %89 = vmatpush1.msra.mxu0 %v63
    %90 = vmatprep.subr.mxu0 0.0
    %91 = vmatpush1.msra.mxu0 %v64
    %92 = vmatprep.subr.mxu0 0.0
    %93 = vmatpush1.msra.mxu0 %v65
    %94 = vmatprep.subr.mxu0 0.0
    %95 = vmatpush1.msra.mxu0 %v66
    %96 = vmatprep.subr.mxu0 0.0
    %97 = vmatpush1.msra.mxu0 %v67
    %98 = vmatprep.subr.mxu0 0.0
    %99 = vmatpush1.msra.mxu0 %v68
    %100 = vmatprep.subr.mxu0 0.0
    %101 = vmatpush1.msra.mxu0 %v69
    %102 = vmatprep.subr.mxu0 0.0
    %103 = vmatpush1.msra.mxu0 %v70
    %104 = vmatprep.subr.mxu0 0.0
    %105 = vmatpush1.msra.mxu0 %v71
    %106 = vmatprep.subr.mxu0 0.0
    %107 = vmatpush1.msra.mxu0 %v72
    %108 = vmatprep.subr.mxu0 0.0
    %109 = vmatpush1.msra.mxu0 %v73
    %110 = vmatprep.subr.mxu0 0.0
    %111 = vmatpush1.msra.mxu0 %v74
    %112 = vmatprep.subr.mxu0 0.0
    %113 = vmatpush1.msra.mxu0 %v75
    %114 = vmatprep.subr.mxu0 0.0
    %115 = vmatpush1.msra.mxu0 %v76
    %116 = vmatprep.subr.mxu0 0.0
    %117 = vmatpush1.msra.mxu0 0.0
    %118 = vmatprep.subr.mxu0 0.0
    %119 = vmatpush1.msra.mxu0 0.0
    %120 = vmatprep.subr.mxu0 0.0
    %121 = vmatpush1.msra.mxu0 0.0
    %122 = vmatprep.subr.mxu0 0.0
    %123 = vmatpush1.msra.mxu0 0.0
    %124 = vmatprep.subr.mxu0 0.0
    %125 = vmatpush1.msra.mxu0 0.0
    %126 = vmatprep.subr.mxu0 0.0
    %127 = vmatpush1.msra.mxu0 0.0
    %128 = vmatprep.subr.mxu0 0.0
    %129 = vmatpush1.msra.mxu0 0.0
    %130 = vmatprep.subr.mxu0 0.0
    %131 = vmatpush1.msra.mxu0 0.0
    %132 = vmatprep.subr.mxu0 0.0
    %133 = vmatpush1.msra.mxu0 0.0
    %134 = vmatprep.subr.mxu0 0.0
    %135 = vmatpush1.msra.mxu0 0.0
    %136 = vmatprep.subr.mxu0 0.0
    %137 = vmatpush1.msra.mxu0 0.0
    %138 = vmatprep.subr.mxu0 0.0
    %139 = vmatpush1.msra.mxu0 0.0
    %140 = vmatprep.subr.mxu0 0.0
    %141 = vmatpush1.msra.mxu0 0.0
    %142 = vmatprep.subr.mxu0 0.0
    %143 = vmatpush1.msra.mxu0 0.0
    %144 = vmatprep.subr.mxu0 0.0
    %145 = vmatpush1.msra.mxu0 0.0
    %146 = vmatprep.subr.mxu0 0.0
    %147 = vmatpush1.msra.mxu0 0.0
    %148 = vmatprep.mubr.f32.mxu0 0.0
    %149 = vmatmul.mubr.f32.gmra.mrb[0].mxu0 %v60
    %v150 = vpop.f32.mrb[0].mxu0
    %v151 = vadd.f32 %v82, %v150
    %v152 = vpop.f32.mrb[0].mxu0
    %153 = vdwg.mxu0
    %v154 = vtanh.pop %v151
    %v155 = vld [vmem:[#allocation7] sm:$0xff]
    %v156 = vld [vmem:[#allocation7 + $0x8] sm:$0xff]
    %v157 = vld [vmem:[#allocation7 + $0x10] sm:$0xff]
    %v158 = vld [vmem:[#allocation7 + $0x18] sm:$0xff]
    %v159 = vld [vmem:[#allocation7 + $0x20] sm:$0xff]
    %v160 = vld [vmem:[#allocation7 + $0x28] sm:$0xff]
    %v161 = vld [vmem:[#allocation7 + $0x30] sm:$0xff]
    %v162 = vld [vmem:[#allocation7 + $0x38] sm:$0xff]
    %v163 = vld [vmem:[#allocation7 + $0x40] sm:$0xff]
    %v164 = vld [vmem:[#allocation7 + $0x48] sm:$0xff]
    %v165 = vld [vmem:[#allocation7 + $0x50] sm:$0xff]
    %v166 = vld [vmem:[#allocation7 + $0x58] sm:$0xff]
    %v167 = vld [vmem:[#allocation7 + $0x60] sm:$0xff]
    %v168 = vld [vmem:[#allocation7 + $0x68] sm:$0xff]
    %v169 = vld [vmem:[#allocation7 + $0x70] sm:$0xff]
    %v170 = vld [vmem:[#allocation7 + $0x78] sm:$0xff]
    %v171 = vld [vmem:[%s4] sm:$0x1]
    %v173 = vlaneseq
    %v174 = vshrl.u32 %v173, 7
    %v175 = vsub.s32 0, %v174
    %v176 = vrot.slane %v171, %v175
    %178 = vmatprep.subr.mxu0 0.0
    %179 = vmatpush1.msra.mxu0 %v155
    %180 = vmatprep.subr.mxu0 0.0
    %181 = vmatpush1.msra.mxu0 %v156
    %182 = vmatprep.subr.mxu0 0.0
    %183 = vmatpush1.msra.mxu0 %v157
    %184 = vmatprep.subr.mxu0 0.0
    %185 = vmatpush1.msra.mxu0 %v158
    %186 = vmatprep.subr.mxu0 0.0
    %187 = vmatpush1.msra.mxu0 %v159
    %188 = vmatprep.subr.mxu0 0.0
    %189 = vmatpush1.msra.mxu0 %v160
    %190 = vmatprep.subr.mxu0 0.0
    %191 = vmatpush1.msra.mxu0 %v161
    %192 = vmatprep.subr.mxu0 0.0
    %193 = vmatpush1.msra.mxu0 %v162
    %194 = vmatprep.subr.mxu0 0.0
    %195 = vmatpush1.msra.mxu0 %v163
    %196 = vmatprep.subr.mxu0 0.0
    %197 = vmatpush1.msra.mxu0 %v164
    %198 = vmatprep.subr.mxu0 0.0
    %199 = vmatpush1.msra.mxu0 %v165
    %200 = vmatprep.subr.mxu0 0.0
    %201 = vmatpush1.msra.mxu0 %v166
    %202 = vmatprep.subr.mxu0 0.0
    %203 = vmatpush1.msra.mxu0 %v167
    %204 = vmatprep.subr.mxu0 0.0
    %205 = vmatpush1.msra.mxu0 %v168
    %206 = vmatprep.subr.mxu0 0.0
    %207 = vmatpush1.msra.mxu0 %v169
    %208 = vmatprep.subr.mxu0 0.0
    %209 = vmatpush1.msra.mxu0 %v170
    %210 = vmatprep.subr.mxu0 0.0
    %211 = vmatpush1.msra.mxu0 0.0
    %212 = vmatprep.subr.mxu0 0.0
    %213 = vmatpush1.msra.mxu0 0.0
    %214 = vmatprep.subr.mxu0 0.0
    %215 = vmatpush1.msra.mxu0 0.0
    %216 = vmatprep.subr.mxu0 0.0
    %217 = vmatpush1.msra.mxu0 0.0
    %218 = vmatprep.subr.mxu0 0.0
    %219 = vmatpush1.msra.mxu0 0.0
    %220 = vmatprep.subr.mxu0 0.0
    %221 = vmatpush1.msra.mxu0 0.0
    %222 = vmatprep.subr.mxu0 0.0
    %223 = vmatpush1.msra.mxu0 0.0
    %224 = vmatprep.subr.mxu0 0.0
    %225 = vmatpush1.msra.mxu0 0.0
    %226 = vmatprep.subr.mxu0 0.0
    %227 = vmatpush1.msra.mxu0 0.0
    %228 = vmatprep.subr.mxu0 0.0
    %229 = vmatpush1.msra.mxu0 0.0
    %230 = vmatprep.subr.mxu0 0.0
    %231 = vmatpush1.msra.mxu0 0.0
    %232 = vmatprep.subr.mxu0 0.0
    %233 = vmatpush1.msra.mxu0 0.0
    %234 = vmatprep.subr.mxu0 0.0
    %235 = vmatpush1.msra.mxu0 0.0
    %236 = vmatprep.subr.mxu0 0.0
    %237 = vmatpush1.msra.mxu0 0.0
    %238 = vmatprep.subr.mxu0 0.0
    %239 = vmatpush1.msra.mxu0 0.0
    %240 = vmatprep.subr.mxu0 0.0
    %241 = vmatpush1.msra.mxu0 0.0
    %242 = vmatprep.mubr.f32.mxu0 0.0
    %243 = vmatmul.mubr.f32.gmra.mrb[0].mxu0 %v154
    %v244 = vpop.f32.mrb[0].mxu0
    %v245 = vadd.f32 %v176, %v244
    %v246 = vpop.f32.mrb[0].mxu0
    %247 = vdwg.mxu0
    %248 = vst [vmem:[#allocation8] sm:$0xff] %v245
    // Predicated region
    $region34: #{tpu_custom_call.1} parent=1 // pred_check
      _
    $region35: #{tpu_custom_call.1} parent=1 // pred_check_branch
      %250 = sbr.rel (0) target = $region37
    $region36: #{tpu_custom_call.1} parent=1 // pred_region
      %s252 = ssub.s32 128, 128
      %253 = vsyncadd [#allocation4], %s252
      %s255 = sshll.u32 [#allocation8], 4
      %s256 = int_to_ptr.vmem [resolvable:$true] %s255
      %258 = dma.vmem_to_hbm [thread:$0]  %s256, 128, %s5, [#allocation4]
    $region37: #{tpu_custom_call.1} parent=1 // pred_fallthru
      _
    // Predicated region
    $region38: #{tpu_custom_call.1} parent=1 // pred_check
      _
    $region39: #{tpu_custom_call.1} parent=1 // pred_check_branch
      %260 = sbr.rel (0) target = $region41
    $region40: #{tpu_custom_call.1} parent=1 // pred_region
      %261 = dma.done [#allocation4], 128
    $region41: #{tpu_custom_call.1} parent=1 // pred_fallthru
      _
    %262 = vsyncpa [#allocation3], 1
    %263 = vsyncpa [#allocation6], 1
    %264 = vsyncpa [#allocation4], 1

</llo_original>
